<compile_context>
chip_gen: v7x
topology: tpu7x:2x2x1
jax: 0.10.0
libtpu: 0.0.40
codegen_flags: <defaults>
</compile_context>

<pallas_src>
import jax
import jax.numpy as jnp
from jax.experimental import pallas as pl
from jax.experimental.pallas import tpu as pltpu

SAMPLE_DIM = 2
HIDDEN = 128
IN_DIM = SAMPLE_DIM + 1        # 3  (x0, x1, t)
IN_AUG = 8                     # [x0, x1, t, 1, 0, 0, 0, 0] -> sublane aligned
OUT_DIM = SAMPLE_DIM           # 2
NEG_SLOPE = 0.01               # torch.nn.functional.leaky_relu default
_LANE = 128                    # TPU lane width


def _leaky_relu(v):
    return jnp.where(v >= 0, v, NEG_SLOPE * v)


def _round_up(n, m):
    return ((n + m - 1) // m) * m


def _tpu_generation():
    """Best-effort chip-generation sniff: 'v5' / 'v6' / 'v7' / None."""
    try:
        kind = jax.devices()[0].device_kind.lower()
    except Exception:
        return None
    if "v7" in kind or "7x" in kind:
        return "v7"
    if "v6" in kind:
        return "v6"
    if "v5" in kind:
        return "v5"
    return None


def _make_kernel(act_dtype):
    """act_dtype: dtype of the fc1/fc2 activation epilogues
    (bf16 on v6e/v7x; f32 on v5e, whose VPU has no bf16 VALU)."""

    def kernel(aT_ref, w1_ref, w2_ref, b2_ref, w3_ref, b3_ref, o_ref):
        # Feature-major layout: every block is (features, batch_tile), i.e. the
        # 128-wide lane axis is the batch axis (lane-dense loads and stores).

        # --- fc1 on the MXU: K=8 bf16 matmul; b1 is folded into W1 via the
        #     constant-1 row of the augmented input. ---------------------------
        s1 = jnp.dot(w1_ref[...], aT_ref[...],
                     preferred_element_type=jnp.float32)     # (HIDDEN, tile) f32
        h1 = _leaky_relu(s1.astype(act_dtype)).astype(jnp.bfloat16)

        # --- fc2: dominant 128x128 matmul, bf16 operands, f32 accumulation ----
        s2 = jnp.dot(w2_ref[...], h1,
                     preferred_element_type=jnp.float32)     # (HIDDEN, tile) f32
        h2 = _leaky_relu((s2 + b2_ref[...]).astype(act_dtype)).astype(jnp.bfloat16)

        # --- fc3: (2,128) bf16 @ (128,tile) bf16, negligible FLOPs ------------
        s3 = jnp.dot(w3_ref[...], h2,
                     preferred_element_type=jnp.float32)     # (OUT_DIM, tile) f32
        o_ref[...] = _leaky_relu(s3 + b3_ref[...]).astype(o_ref.dtype)

    return kernel


def denoiser_forward(x, t, params, *, batch_tile=8192):
    """x: (B, SAMPLE_DIM) f32, t: (B, 1) f32 -> (B, SAMPLE_DIM) f32."""
    w1, b1, w2, b2, w3, b3 = params        # torch layout: W = (out,in), b = (out,1)

    gen = _tpu_generation()
    n_tc = 2 if gen == "v7" else 1                       # v7x: 2 TensorCores/chip
    act_dtype = jnp.bfloat16 if gen in ("v6", "v7") else jnp.float32
    max_tile = 8192 if gen == "v7" else 16384            # v7x VMEM is only 64 MiB

    B = x.shape[0]
    batch_tile = max(_LANE, _round_up(batch_tile, _LANE))
    tile = min(batch_tile, max_tile, _round_up(B, _LANE))
    # v7x only: if the whole batch fits in one tile, split it so both
    # TensorCores get work under "parallel" grid semantics.
    if n_tc > 1 and _round_up(B, tile) == tile and tile % (n_tc * _LANE) == 0:
        tile //= n_tc
    B_pad = _round_up(B, tile)
    grid = (B_pad // tile,)

    # Augmented, feature-major, bf16 input block [x0; x1; t; 1; 0...] (8, B_pad).
    ones = jnp.ones((B, 1), x.dtype)
    a = jnp.concatenate([x, t, ones], axis=1)                       # (B, 4)
    a = jnp.pad(a, ((0, B_pad - B), (0, IN_AUG - (IN_DIM + 1))))    # (B_pad, 8)
    aT = a.T.astype(jnp.bfloat16)                                   # (8, B_pad)

    # Prepared parameters: b1 folded into W1 as an extra column; bf16 MXU operands.
    w1a = jnp.pad(jnp.concatenate([w1, b1], axis=1),
                  ((0, 0), (0, IN_AUG - (IN_DIM + 1)))).astype(jnp.bfloat16)
    w2c = w2.astype(jnp.bfloat16)
    w3c = w3.astype(jnp.bfloat16)

    # Generation-aware scoped-VMEM budget: live intermediates are ~1.5 KiB per
    # batch element (two f32 + two bf16 (128, tile) tensors) plus the
    # double-buffered I/O blocks; v5e's default scoped limit is only 16 MiB and
    # v7x physically has 64 MiB, so set it explicitly.
    est = tile * 2048 + (8 << 20)
    cap = (48 << 20) if gen == "v7" else (100 << 20)
    vmem_limit = int(min(cap, max(32 << 20, est)))

    full = lambda i: (0, 0)   # resident operands: constant block index (no re-DMA)

    outT = pl.pallas_call(
        _make_kernel(act_dtype),
        out_shape=jax.ShapeDtypeStruct((OUT_DIM, B_pad), jnp.float32),
        grid_spec=pltpu.PrefetchScalarGridSpec(
            num_scalar_prefetch=0,
            grid=grid,
            in_specs=[
                pl.BlockSpec((IN_AUG, tile), lambda i: (0, i)),     # [x;t;1] tile (bf16)
                pl.BlockSpec((HIDDEN, IN_AUG), full),               # W1|b1 (bf16)
                pl.BlockSpec((HIDDEN, HIDDEN), full),               # W2    (bf16)
                pl.BlockSpec((HIDDEN, 1), full),                    # b2    (f32)
                pl.BlockSpec((OUT_DIM, HIDDEN), full),              # W3    (bf16)
                pl.BlockSpec((OUT_DIM, 1), full),                   # b3    (f32)
            ],
            out_specs=pl.BlockSpec((OUT_DIM, tile), lambda i: (0, i)),
        ),
        compiler_params=pltpu.CompilerParams(
            dimension_semantics=("parallel",),
            vmem_limit_bytes=vmem_limit),
    )(aT, w1a, w2c, b2, w3c, b3)

    return outT[:, :B].T                                   # (B, SAMPLE_DIM)


def init_params(key):
    """Deterministic init; weights in torch layout W=(out,in), b=(out,1)."""
    ks = jax.random.split(key, 6)

    def lin(kw, kb, fan_in, fan_out):
        bound = 1.0 / jnp.sqrt(jnp.float32(fan_in))
        w = jax.random.uniform(kw, (fan_out, fan_in), jnp.float32, -bound, bound)
        b = jax.random.uniform(kb, (fan_out, 1), jnp.float32, -bound, bound)
        return w, b

    w1, b1 = lin(ks[0], ks[1], IN_DIM, HIDDEN)
    w2, b2 = lin(ks[2], ks[3], HIDDEN, HIDDEN)
    w3, b3 = lin(ks[4], ks[5], HIDDEN, OUT_DIM)
    return (w1, b1, w2, b2, w3, b3)


def reference_forward(x, t, params, act_dtype=jnp.float32):
    """Plain-JAX reference mirroring the kernel's numerics (bf16 MXU operands,
    f32 accumulation, epilogues in act_dtype); matches the PyTorch module up
    to bf16 rounding."""
    w1, b1, w2, b2, w3, b3 = params
    bf16 = jnp.bfloat16
    a = jnp.concatenate([x, t, jnp.ones((x.shape[0], 1), x.dtype)], axis=1)  # (B, 4)
    w1a = jnp.concatenate([w1, b1], axis=1)                                  # (128, 4)
    s1 = jnp.dot(a.astype(bf16), w1a.T.astype(bf16),
                 preferred_element_type=jnp.float32)
    h1 = _leaky_relu(s1.astype(act_dtype)).astype(bf16)
    s2 = jnp.dot(h1, w2.T.astype(bf16), preferred_element_type=jnp.float32)
    h2 = _leaky_relu((s2 + b2[:, 0]).astype(act_dtype)).astype(bf16)
    s3 = jnp.dot(h2, w3.T.astype(bf16), preferred_element_type=jnp.float32)
    return _leaky_relu(s3 + b3[:, 0])


if __name__ == "__main__":
    key = jax.random.PRNGKey(0)
    kx, kt, kp = jax.random.split(key, 3)

    B = 8
    x = jax.random.normal(kx, (B, SAMPLE_DIM), jnp.float32)
    t = jax.random.uniform(kt, (B, 1), jnp.float32)
    params = init_params(kp)

    out = jax.block_until_ready(jax.jit(denoiser_forward)(x, t, params))

    gen = _tpu_generation()
    act_dtype = jnp.bfloat16 if gen in ("v6", "v7") else jnp.float32
    ref = reference_forward(x, t, params, act_dtype=act_dtype)

    assert out.shape == (B, SAMPLE_DIM)
    assert jnp.allclose(out, ref, atol=2e-2, rtol=2e-2), (
        "max abs diff = %f" % float(jnp.max(jnp.abs(out - ref))))

    print("KERNEL_OK")
</pallas_src>

<mosaic_0001>
module attributes {stable_mosaic.version = 11 : i64} {
  func.func @kernel(%arg0: i32, %arg1: memref<8x128xbf16, #tpu.memory_space<vmem>>, %arg2: memref<128x8xbf16, #tpu.memory_space<vmem>>, %arg3: memref<128x128xbf16, #tpu.memory_space<vmem>>, %arg4: memref<128x1xf32, #tpu.memory_space<vmem>>, %arg5: memref<2x128xbf16, #tpu.memory_space<vmem>>, %arg6: memref<2x1xf32, #tpu.memory_space<vmem>>, %arg7: memref<2x128xf32, #tpu.memory_space<vmem>>) attributes {dimension_semantics = [#tpu.dimension_semantics<parallel>], iteration_bounds = array<i64: 1>, scalar_prefetch = 0 : i64, scratch_operands = 0 : i64, tpu.core_type = #tpu.core_type<tc>, window_params = [{transform_indices = @transform_0, window_bounds = array<i64: 8, 128>}, {pipeline_mode = #tpu.pipeline_mode<synchronous>, transform_indices = @transform_1, window_bounds = array<i64: 128, 8>}, {pipeline_mode = #tpu.pipeline_mode<synchronous>, transform_indices = @transform_2, window_bounds = array<i64: 128, 128>}, {pipeline_mode = #tpu.pipeline_mode<synchronous>, transform_indices = @transform_3, window_bounds = array<i64: 128, 1>}, {pipeline_mode = #tpu.pipeline_mode<synchronous>, transform_indices = @transform_4, window_bounds = array<i64: 2, 128>}, {pipeline_mode = #tpu.pipeline_mode<synchronous>, transform_indices = @transform_5, window_bounds = array<i64: 2, 1>}, {transform_indices = @transform_6, window_bounds = array<i64: 2, 128>}]} {
    %c0 = arith.constant 0 : index
    %c0_0 = arith.constant 0 : index
    %0 = vector.load %arg2[%c0, %c0_0] : memref<128x8xbf16, #tpu.memory_space<vmem>>, vector<128x8xbf16>
    %c0_1 = arith.constant 0 : index
    %c0_2 = arith.constant 0 : index
    %1 = vector.load %arg1[%c0_1, %c0_2] : memref<8x128xbf16, #tpu.memory_space<vmem>>, vector<8x128xbf16>
    %cst = arith.constant dense<0.000000e+00> : vector<128x128xf32>
    %2 = tpu.matmul %0, %1, %cst {dimension_numbers = #tpu.dot_dimension_numbers<[1], [0], [0], [1], [0, 0, 1, 1], [], []>} : vector<128x8xbf16>, vector<8x128xbf16>, vector<128x128xf32> -> vector<128x128xf32>
    %cst_3 = arith.constant 0.000000e+00 : f32
    %3 = vector.broadcast %cst_3 : f32 to vector<128x128xf32>
    %4 = arith.cmpf oge, %2, %3 : vector<128x128xf32>
    %cst_4 = arith.constant 0.00999999977 : f32
    %5 = vector.broadcast %cst_4 : f32 to vector<128x128xf32>
    %6 = arith.mulf %5, %2 : vector<128x128xf32>
    %7 = arith.select %4, %2, %6 : vector<128x128xi1>, vector<128x128xf32>
    %8 = arith.truncf %7 : vector<128x128xf32> to vector<128x128xbf16>
    %c0_5 = arith.constant 0 : index
    %c0_6 = arith.constant 0 : index
    %9 = vector.load %arg3[%c0_5, %c0_6] : memref<128x128xbf16, #tpu.memory_space<vmem>>, vector<128x128xbf16>
    %cst_7 = arith.constant dense<0.000000e+00> : vector<128x128xf32>
    %10 = tpu.matmul %9, %8, %cst_7 {dimension_numbers = #tpu.dot_dimension_numbers<[1], [0], [0], [1], [0, 0, 1, 1], [], []>} : vector<128x128xbf16>, vector<128x128xbf16>, vector<128x128xf32> -> vector<128x128xf32>
    %c0_8 = arith.constant 0 : index
    %c0_9 = arith.constant 0 : index
    %11 = vector.load %arg4[%c0_8, %c0_9] : memref<128x1xf32, #tpu.memory_space<vmem>>, vector<128x1xf32>
    %12 = vector.broadcast %11 : vector<128x1xf32> to vector<128x128xf32>
    %13 = arith.addf %10, %12 : vector<128x128xf32>
    %cst_10 = arith.constant 0.000000e+00 : f32
    %14 = vector.broadcast %cst_10 : f32 to vector<128x128xf32>
    %15 = arith.cmpf oge, %13, %14 : vector<128x128xf32>
    %cst_11 = arith.constant 0.00999999977 : f32
    %16 = vector.broadcast %cst_11 : f32 to vector<128x128xf32>
    %17 = arith.mulf %16, %13 : vector<128x128xf32>
    %18 = arith.select %15, %13, %17 : vector<128x128xi1>, vector<128x128xf32>
    %19 = arith.truncf %18 : vector<128x128xf32> to vector<128x128xbf16>
    %c0_12 = arith.constant 0 : index
    %c0_13 = arith.constant 0 : index
    %20 = vector.load %arg5[%c0_12, %c0_13] : memref<2x128xbf16, #tpu.memory_space<vmem>>, vector<2x128xbf16>
    %cst_14 = arith.constant dense<0.000000e+00> : vector<2x128xf32>
    %21 = tpu.matmul %20, %19, %cst_14 {dimension_numbers = #tpu.dot_dimension_numbers<[1], [0], [0], [1], [0, 0, 1, 1], [], []>} : vector<2x128xbf16>, vector<128x128xbf16>, vector<2x128xf32> -> vector<2x128xf32>
    %c0_15 = arith.constant 0 : index
    %c0_16 = arith.constant 0 : index
    %22 = vector.load %arg6[%c0_15, %c0_16] : memref<2x1xf32, #tpu.memory_space<vmem>>, vector<2x1xf32>
    %23 = vector.broadcast %22 : vector<2x1xf32> to vector<2x128xf32>
    %24 = arith.addf %21, %23 : vector<2x128xf32>
    %cst_17 = arith.constant 0.000000e+00 : f32
    %25 = vector.broadcast %cst_17 : f32 to vector<2x128xf32>
    %26 = arith.cmpf oge, %24, %25 : vector<2x128xf32>
    %cst_18 = arith.constant 0.00999999977 : f32
    %27 = vector.broadcast %cst_18 : f32 to vector<2x128xf32>
    %28 = arith.mulf %27, %24 : vector<2x128xf32>
    %29 = arith.select %26, %24, %28 : vector<2x128xi1>, vector<2x128xf32>
    %c0_19 = arith.constant 0 : index
    %c0_20 = arith.constant 0 : index
    %30 = vector.load %arg7[%c0_19, %c0_20] : memref<2x128xf32, #tpu.memory_space<vmem>>, vector<2x128xf32>
    tpu.vector_store %arg7[%c0_19, %c0_20], %29 {strides = array<i32>} : memref<2x128xf32, #tpu.memory_space<vmem>>, vector<2x128xf32>,
    return
  }
  func.func @transform_0(%arg0: i32) -> (i32, i32) {
    %c0_i32 = arith.constant 0 : i32
    %c0_i32_0 = arith.constant 0 : i32
    return %c0_i32, %arg0 : i32, i32
  }
  func.func @transform_1(%arg0: i32) -> (i32, i32) {
    %c0_i32 = arith.constant 0 : i32
    %c0_i32_0 = arith.constant 0 : i32
    %c0_i32_1 = arith.constant 0 : i32
    return %c0_i32, %c0_i32_0 : i32, i32
  }
  func.func @transform_2(%arg0: i32) -> (i32, i32) {
    %c0_i32 = arith.constant 0 : i32
    %c0_i32_0 = arith.constant 0 : i32
    %c0_i32_1 = arith.constant 0 : i32
    return %c0_i32, %c0_i32_0 : i32, i32
  }
  func.func @transform_3(%arg0: i32) -> (i32, i32) {
    %c0_i32 = arith.constant 0 : i32
    %c0_i32_0 = arith.constant 0 : i32
    %c0_i32_1 = arith.constant 0 : i32
    return %c0_i32, %c0_i32_0 : i32, i32
  }
  func.func @transform_4(%arg0: i32) -> (i32, i32) {
    %c0_i32 = arith.constant 0 : i32
    %c0_i32_0 = arith.constant 0 : i32
    %c0_i32_1 = arith.constant 0 : i32
    return %c0_i32, %c0_i32_0 : i32, i32
  }
  func.func @transform_5(%arg0: i32) -> (i32, i32) {
    %c0_i32 = arith.constant 0 : i32
    %c0_i32_0 = arith.constant 0 : i32
    %c0_i32_1 = arith.constant 0 : i32
    return %c0_i32, %c0_i32_0 : i32, i32
  }
  func.func @transform_6(%arg0: i32) -> (i32, i32) {
    %c0_i32 = arith.constant 0 : i32
    %c0_i32_0 = arith.constant 0 : i32
    return %c0_i32, %arg0 : i32, i32
  }
}

</mosaic_0001>

<llo_original>
// kernel: denoiser_forward.1
$region0: #{denoiser_forward.1}
  #allocation0 [shape = 'u32[]', space=smem, size = 0x4, offset = 0x4, fixed_abs, tag = 'smem constant byte address 0x4 - core index']
  #allocation1 [shape = 'u32[144,128]{1,0:T(1,128)}', space=vmem, size = 0x12000, scoped, tag = 'internal scratch']
  %s0 = inlined_call_operand.vmem [shape: bf16[8,128], index: 0, kind: input, shape index: {}]
  %s1 = inlined_call_operand.vmem [shape: bf16[128,8], index: 1, kind: input, shape index: {}]
  %s2 = inlined_call_operand.vmem [shape: bf16[128,128], index: 2, kind: input, shape index: {}]
  %s3 = inlined_call_operand.vmem [shape: f32[128,1], index: 3, kind: input, shape index: {}]
  %s4 = inlined_call_operand.vmem [shape: bf16[2,128], index: 4, kind: input, shape index: {}]
  %s5 = inlined_call_operand.vmem [shape: f32[2,1], index: 5, kind: input, shape index: {}]
  %s6 = inlined_call_operand.vmem [shape: f32[2,128], index: 6, kind: output, shape index: {}]
  %s7 = sld [smem:[#allocation0]]
  $region34: #{denoiser_forward.1} parent=0
    _
  %s9 = ssub.s32 1, %s7
  %s10 = scalar_select 0, %s9, %s7
  // Predicated region
  $region2: #{denoiser_forward.1} parent=0 // pred_check
    _
  $region3: #{denoiser_forward.1} parent=0 // pred_check_branch
    %12 = sbr.rel (0) target = $region5
  $region4: #{denoiser_forward.1} parent=0 // pred_region
    _
  $region5: #{denoiser_forward.1} parent=0 // pred_fallthru
    _
  // Predicated region
  $region6: #{denoiser_forward.1} parent=0 // pred_check
    _
  $region7: #{denoiser_forward.1} parent=0 // pred_check_branch
    %14 = sbr.rel (0) target = $region9
  $region8: #{denoiser_forward.1} parent=0 // pred_region
    _
  $region9: #{denoiser_forward.1} parent=0 // pred_fallthru
    _
  // Predicated region
  $region10: #{denoiser_forward.1} parent=0 // pred_check
    _
  $region11: #{denoiser_forward.1} parent=0 // pred_check_branch
    %16 = sbr.rel (0) target = $region13
  $region12: #{denoiser_forward.1} parent=0 // pred_region
    _
  $region13: #{denoiser_forward.1} parent=0 // pred_fallthru
    _
  // Predicated region
  $region14: #{denoiser_forward.1} parent=0 // pred_check
    _
  $region15: #{denoiser_forward.1} parent=0 // pred_check_branch
    %18 = sbr.rel (0) target = $region17
  $region16: #{denoiser_forward.1} parent=0 // pred_region
    _
  $region17: #{denoiser_forward.1} parent=0 // pred_fallthru
    _
  // Predicated region
  $region18: #{denoiser_forward.1} parent=0 // pred_check
    _
  $region19: #{denoiser_forward.1} parent=0 // pred_check_branch
    %20 = sbr.rel (0) target = $region21
  $region20: #{denoiser_forward.1} parent=0 // pred_region
    _
  $region21: #{denoiser_forward.1} parent=0 // pred_fallthru
    _
  // Predicated region
  $region22: #{denoiser_forward.1} parent=0 // pred_check
    _
  $region23: #{denoiser_forward.1} parent=0 // pred_check_branch
    %22 = sbr.rel (0) target = $region25
  $region24: #{denoiser_forward.1} parent=0 // pred_region
    _
  $region25: #{denoiser_forward.1} parent=0 // pred_fallthru
    _
  %v24 = vld [vmem:[%s1] sm:$0xf]
  %v25 = vld [vmem:[%s1 + $0x4] sm:$0xf]
  %v26 = vld [vmem:[%s1 + $0x8] sm:$0xf]
  %v27 = vld [vmem:[%s1 + $0xc] sm:$0xf]
  %v28 = vld [vmem:[%s1 + $0x10] sm:$0xf]
  %v29 = vld [vmem:[%s1 + $0x14] sm:$0xf]
  %v30 = vld [vmem:[%s1 + $0x18] sm:$0xf]
  %v31 = vld [vmem:[%s1 + $0x1c] sm:$0xf]
  %v32 = vld [vmem:[%s1 + $0x20] sm:$0xf]
  %v33 = vld [vmem:[%s1 + $0x24] sm:$0xf]
  %v34 = vld [vmem:[%s1 + $0x28] sm:$0xf]
  %v35 = vld [vmem:[%s1 + $0x2c] sm:$0xf]
  %v36 = vld [vmem:[%s1 + $0x30] sm:$0xf]
  %v37 = vld [vmem:[%s1 + $0x34] sm:$0xf]
  %v38 = vld [vmem:[%s1 + $0x38] sm:$0xf]
  %v39 = vld [vmem:[%s1 + $0x3c] sm:$0xf]
  %v40 = vld [vmem:[%s0] sm:$0xf]
  %v57 = vunpack.c.l.b16 %v24
  %v58 = vunpack.c.l.b16 %v25
  %v59 = vunpack.c.l.b16 %v26
  %v60 = vunpack.c.l.b16 %v27
  %v61 = vunpack.c.l.b16 %v28
  %v62 = vunpack.c.l.b16 %v29
  %v63 = vunpack.c.l.b16 %v30
  %v64 = vunpack.c.l.b16 %v31
  %v65 = vunpack.c.l.b16 %v32
  %v66 = vunpack.c.l.b16 %v33
  %v67 = vunpack.c.l.b16 %v34
  %v68 = vunpack.c.l.b16 %v35
  %v69 = vunpack.c.l.b16 %v36
  %v70 = vunpack.c.l.b16 %v37
  %v71 = vunpack.c.l.b16 %v38
  %v72 = vunpack.c.l.b16 %v39
  %v73 = vpack.c.b16 %v58, %v57
  %v74 = vpack.c.b16 %v60, %v59
  %v75 = vpack.c.b16 %v62, %v61
  %v76 = vpack.c.b16 %v64, %v63
  %v77 = vpack.c.b16 %v66, %v65
  %v78 = vpack.c.b16 %v68, %v67
  %v79 = vpack.c.b16 %v70, %v69
  %v80 = vpack.c.b16 %v72, %v71
  %vm81 = vcmask 64512
  %v83 = vsel %vm81, %v73, 0
  %v86 = vsel %vm81, %v74, 0
  %v89 = vsel %vm81, %v75, 0
  %v92 = vsel %vm81, %v76, 0
  %v95 = vsel %vm81, %v77, 0
  %v98 = vsel %vm81, %v78, 0
  %v101 = vsel %vm81, %v79, 0
  %v104 = vsel %vm81, %v80, 0
  %vm106 = vcmask 1043456
  %v108 = vsel %vm106, %v40, 0
  %110 = vmatprep.subr.bf16.mxu0 0
  %111 = vmatpush1.bf16.msra.mxu0 %v108
  %112 = vmatprep.subr.bf16.mxu0 0
  %113 = vmatpush1.bf16.msra.mxu0 0
  %114 = vmatprep.subr.bf16.mxu0 0
  %115 = vmatpush1.bf16.msra.mxu0 0
  %116 = vmatprep.subr.bf16.mxu0 0
  %117 = vmatpush1.bf16.msra.mxu0 0
  %118 = vmatprep.subr.bf16.mxu0 0
  %119 = vmatpush1.bf16.msra.mxu0 0
  %120 = vmatprep.subr.bf16.mxu0 0
  %121 = vmatpush1.bf16.msra.mxu0 0
  %122 = vmatprep.subr.bf16.mxu0 0
  %123 = vmatpush1.bf16.msra.mxu0 0
  %124 = vmatprep.subr.bf16.mxu0 0
  %125 = vmatpush1.bf16.msra.mxu0 0
  %126 = vmatprep.subr.bf16.mxu0 0
  %127 = vmatpush1.bf16.msra.mxu0 0
  %128 = vmatprep.subr.bf16.mxu0 0
  %129 = vmatpush1.bf16.msra.mxu0 0
  %130 = vmatprep.subr.bf16.mxu0 0
  %131 = vmatpush1.bf16.msra.mxu0 0
  %132 = vmatprep.subr.bf16.mxu0 0
  %133 = vmatpush1.bf16.msra.mxu0 0
  %134 = vmatprep.subr.bf16.mxu0 0
  %135 = vmatpush1.bf16.msra.mxu0 0
  %136 = vmatprep.subr.bf16.mxu0 0
  %137 = vmatpush1.bf16.msra.mxu0 0
  %138 = vmatprep.subr.bf16.mxu0 0
  %139 = vmatpush1.bf16.msra.mxu0 0
  %140 = vmatprep.subr.bf16.mxu0 0
  %141 = vmatpush1.bf16.msra.mxu0 0
  %142 = vmatprep.mubr.bf16.mxu0 0
  %143 = vmatmul.mubr.bf16.gmra.mrb[0].mxu0 %v83
  %v144 = vpop.f32.mrb[0].mxu0
  %v145 = vadd.f32 0.0, %v144
  %v146 = vpop.f32.mrb[0].mxu0
  %v147 = vpop.f32.mrb[0].mxu0
  %v148 = vadd.f32 0.0, %v147
  %v149 = vpop.f32.mrb[0].mxu0
  %150 = vmatprep.mubr.bf16.mxu0 0
  %151 = vmatmul.mubr.bf16.gmra.mrb[0].mxu0 %v86
  %v152 = vpop.f32.mrb[0].mxu0
  %v153 = vadd.f32 0.0, %v152
  %v154 = vpop.f32.mrb[0].mxu0
  %v155 = vpop.f32.mrb[0].mxu0
  %v156 = vadd.f32 0.0, %v155
  %v157 = vpop.f32.mrb[0].mxu0
  %158 = vmatprep.mubr.bf16.mxu0 0
  %159 = vmatmul.mubr.bf16.gmra.mrb[0].mxu0 %v89
  %v160 = vpop.f32.mrb[0].mxu0
  %v161 = vadd.f32 0.0, %v160
  %v162 = vpop.f32.mrb[0].mxu0
  %v163 = vpop.f32.mrb[0].mxu0
  %v164 = vadd.f32 0.0, %v163
  %v165 = vpop.f32.mrb[0].mxu0
  %166 = vmatprep.mubr.bf16.mxu0 0
  %167 = vmatmul.mubr.bf16.gmra.mrb[0].mxu0 %v92
  %v168 = vpop.f32.mrb[0].mxu0
  %v169 = vadd.f32 0.0, %v168
  %v170 = vpop.f32.mrb[0].mxu0
  %v171 = vpop.f32.mrb[0].mxu0
  %v172 = vadd.f32 0.0, %v171
  %v173 = vpop.f32.mrb[0].mxu0
  %174 = vmatprep.mubr.bf16.mxu0 0
  %175 = vmatmul.mubr.bf16.gmra.mrb[0].mxu0 %v95
  %v176 = vpop.f32.mrb[0].mxu0
  %v177 = vadd.f32 0.0, %v176
  %v178 = vpop.f32.mrb[0].mxu0
  %v179 = vpop.f32.mrb[0].mxu0
  %v180 = vadd.f32 0.0, %v179
  %v181 = vpop.f32.mrb[0].mxu0
  %182 = vmatprep.mubr.bf16.mxu0 0
  %183 = vmatmul.mubr.bf16.gmra.mrb[0].mxu0 %v98
  %v184 = vpop.f32.mrb[0].mxu0
  %v185 = vadd.f32 0.0, %v184
  %v186 = vpop.f32.mrb[0].mxu0
  %v187 = vpop.f32.mrb[0].mxu0
  %v188 = vadd.f32 0.0, %v187
  %v189 = vpop.f32.mrb[0].mxu0
  %190 = vmatprep.mubr.bf16.mxu0 0
  %191 = vmatmul.mubr.bf16.gmra.mrb[0].mxu0 %v101
  %v192 = vpop.f32.mrb[0].mxu0
  %v193 = vadd.f32 0.0, %v192
  %v194 = vpop.f32.mrb[0].mxu0
  %v195 = vpop.f32.mrb[0].mxu0
  %v196 = vadd.f32 0.0, %v195
  %v197 = vpop.f32.mrb[0].mxu0
  %198 = vmatprep.mubr.bf16.mxu0 0
  %199 = vmatmul.mubr.bf16.gmra.mrb[0].mxu0 %v104
  %v200 = vpop.f32.mrb[0].mxu0
  %v201 = vadd.f32 0.0, %v200
  %v202 = vpop.f32.mrb[0].mxu0
  %v203 = vpop.f32.mrb[0].mxu0
  %v204 = vadd.f32 0.0, %v203
  %v205 = vpop.f32.mrb[0].mxu0
  %206 = vdwg.mxu0
  %vm207 = vcmp.ge.f32.partialorder %v145, 0.0
  %vm208 = vcmp.ge.f32.partialorder %v148, 0.0
  %vm209 = vcmp.ge.f32.partialorder %v153, 0.0
  %vm210 = vcmp.ge.f32.partialorder %v156, 0.0
  %vm211 = vcmp.ge.f32.partialorder %v161, 0.0
  %vm212 = vcmp.ge.f32.partialorder %v164, 0.0
  %vm213 = vcmp.ge.f32.partialorder %v169, 0.0
  %vm214 = vcmp.ge.f32.partialorder %v172, 0.0
  %vm215 = vcmp.ge.f32.partialorder %v177, 0.0
  %vm216 = vcmp.ge.f32.partialorder %v180, 0.0
  %vm217 = vcmp.ge.f32.partialorder %v185, 0.0
  %vm218 = vcmp.ge.f32.partialorder %v188, 0.0
  %vm219 = vcmp.ge.f32.partialorder %v193, 0.0
  %vm220 = vcmp.ge.f32.partialorder %v196, 0.0
  %vm221 = vcmp.ge.f32.partialorder %v201, 0.0
  %vm222 = vcmp.ge.f32.partialorder %v204, 0.0
  %v223 = vmul.f32 %v145, 0.01
  %v224 = vmul.f32 %v148, 0.01
  %v225 = vmul.f32 %v153, 0.01
  %v226 = vmul.f32 %v156, 0.01
  %v227 = vmul.f32 %v161, 0.01
  %v228 = vmul.f32 %v164, 0.01
  %v229 = vmul.f32 %v169, 0.01
  %v230 = vmul.f32 %v172, 0.01
  %v231 = vmul.f32 %v177, 0.01
  %v232 = vmul.f32 %v180, 0.01
  %v233 = vmul.f32 %v185, 0.01
  %v234 = vmul.f32 %v188, 0.01
  %v235 = vmul.f32 %v193, 0.01
  %v236 = vmul.f32 %v196, 0.01
  %v237 = vmul.f32 %v201, 0.01
  %v238 = vmul.f32 %v204, 0.01
  %v239 = vsel %vm207, %v145, %v223
  %v240 = vsel %vm208, %v148, %v224
  %v241 = vsel %vm209, %v153, %v225
  %v242 = vsel %vm210, %v156, %v226
  %v243 = vsel %vm211, %v161, %v227
  %v244 = vsel %vm212, %v164, %v228
  %v245 = vsel %vm213, %v169, %v229
  %v246 = vsel %vm214, %v172, %v230
  %v247 = vsel %vm215, %v177, %v231
  %v248 = vsel %vm216, %v180, %v232
  %v249 = vsel %vm217, %v185, %v233
  %v250 = vsel %vm218, %v188, %v234
  %v251 = vsel %vm219, %v193, %v235
  %v252 = vsel %vm220, %v196, %v236
  %v253 = vsel %vm221, %v201, %v237
  %v254 = vsel %vm222, %v204, %v238
  %v255 = vpack.c.bf16 %v240, %v239
  %v256 = vpack.c.bf16 %v242, %v241
  %v257 = vpack.c.bf16 %v244, %v243
  %v258 = vpack.c.bf16 %v246, %v245
  %v259 = vpack.c.bf16 %v248, %v247
  %v260 = vpack.c.bf16 %v250, %v249
  %v261 = vpack.c.bf16 %v252, %v251
  %v262 = vpack.c.bf16 %v254, %v253
  %v263 = vld [vmem:[%s2] sm:$0xf]
  %v264 = vld [vmem:[%s2 + $0x4] sm:$0xf]
  %v265 = vld [vmem:[%s2 + $0x8] sm:$0xf]
  %v266 = vld [vmem:[%s2 + $0xc] sm:$0xf]
  %v267 = vld [vmem:[%s2 + $0x10] sm:$0xf]
  %v268 = vld [vmem:[%s2 + $0x14] sm:$0xf]
  %v269 = vld [vmem:[%s2 + $0x18] sm:$0xf]
  %v270 = vld [vmem:[%s2 + $0x1c] sm:$0xf]
  %v271 = vld [vmem:[%s2 + $0x20] sm:$0xf]
  %v272 = vld [vmem:[%s2 + $0x24] sm:$0xf]
  %v273 = vld [vmem:[%s2 + $0x28] sm:$0xf]
  %v274 = vld [vmem:[%s2 + $0x2c] sm:$0xf]
  %v275 = vld [vmem:[%s2 + $0x30] sm:$0xf]
  %v276 = vld [vmem:[%s2 + $0x34] sm:$0xf]
  %v277 = vld [vmem:[%s2 + $0x38] sm:$0xf]
  %v278 = vld [vmem:[%s2 + $0x3c] sm:$0xf]
  %v279 = vld [vmem:[%s3] sm:$0xff]
  %v280 = vld [vmem:[%s3 + $0x8] sm:$0xff]
  %v281 = vld [vmem:[%s3 + $0x10] sm:$0xff]
  %v282 = vld [vmem:[%s3 + $0x18] sm:$0xff]
  %v283 = vld [vmem:[%s3 + $0x20] sm:$0xff]
  %v284 = vld [vmem:[%s3 + $0x28] sm:$0xff]
  %v285 = vld [vmem:[%s3 + $0x30] sm:$0xff]
  %v286 = vld [vmem:[%s3 + $0x38] sm:$0xff]
  %v287 = vld [vmem:[%s3 + $0x40] sm:$0xff]
  %v288 = vld [vmem:[%s3 + $0x48] sm:$0xff]
  %v289 = vld [vmem:[%s3 + $0x50] sm:$0xff]
  %v290 = vld [vmem:[%s3 + $0x58] sm:$0xff]
  %v291 = vld [vmem:[%s3 + $0x60] sm:$0xff]
  %v292 = vld [vmem:[%s3 + $0x68] sm:$0xff]
  %v293 = vld [vmem:[%s3 + $0x70] sm:$0xff]
  %v294 = vld [vmem:[%s3 + $0x78] sm:$0xff]
  %296 = vset.pattern.permute.xlu0 0
  %297 = vperm.xlu0 %296, %v279
  %v298 = vpop.permute.xlu0 %297
  %301 = vset.pattern.permute.xlu0 0
  %302 = vperm.xlu0 %301, %v280
  %v303 = vpop.permute.xlu0 %302
  %306 = vset.pattern.permute.xlu0 0
  %307 = vperm.xlu0 %306, %v281
  %v308 = vpop.permute.xlu0 %307
  %311 = vset.pattern.permute.xlu0 0
  %312 = vperm.xlu0 %311, %v282
  %v313 = vpop.permute.xlu0 %312
  %316 = vset.pattern.permute.xlu0 0
  %317 = vperm.xlu0 %316, %v283
  %v318 = vpop.permute.xlu0 %317
  %321 = vset.pattern.permute.xlu0 0
  %322 = vperm.xlu0 %321, %v284
  %v323 = vpop.permute.xlu0 %322
  %326 = vset.pattern.permute.xlu0 0
  %327 = vperm.xlu0 %326, %v285
  %v328 = vpop.permute.xlu0 %327
  %331 = vset.pattern.permute.xlu0 0
  %332 = vperm.xlu0 %331, %v286
  %v333 = vpop.permute.xlu0 %332
  %336 = vset.pattern.permute.xlu0 0
  %337 = vperm.xlu0 %336, %v287
  %v338 = vpop.permute.xlu0 %337
  %341 = vset.pattern.permute.xlu0 0
  %342 = vperm.xlu0 %341, %v288
  %v343 = vpop.permute.xlu0 %342
  %346 = vset.pattern.permute.xlu0 0
  %347 = vperm.xlu0 %346, %v289
  %v348 = vpop.permute.xlu0 %347
  %351 = vset.pattern.permute.xlu0 0
  %352 = vperm.xlu0 %351, %v290
  %v353 = vpop.permute.xlu0 %352
  %356 = vset.pattern.permute.xlu0 0
  %357 = vperm.xlu0 %356, %v291
  %v358 = vpop.permute.xlu0 %357
  %361 = vset.pattern.permute.xlu0 0
  %362 = vperm.xlu0 %361, %v292
  %v363 = vpop.permute.xlu0 %362
  %366 = vset.pattern.permute.xlu0 0
  %367 = vperm.xlu0 %366, %v293
  %v368 = vpop.permute.xlu0 %367
  %371 = vset.pattern.permute.xlu0 0
  %372 = vperm.xlu0 %371, %v294
  %v373 = vpop.permute.xlu0 %372
  %v391 = vunpack.c.l.b16 %v263
  %v392 = vunpack.c.l.b16 %v264
  %v393 = vunpack.c.l.b16 %v265
  %v394 = vunpack.c.l.b16 %v266
  %v395 = vunpack.c.l.b16 %v267
  %v396 = vunpack.c.l.b16 %v268
  %v397 = vunpack.c.l.b16 %v269
  %v398 = vunpack.c.l.b16 %v270
  %v399 = vunpack.c.l.b16 %v271
  %v400 = vunpack.c.l.b16 %v272
  %v401 = vunpack.c.l.b16 %v273
  %v402 = vunpack.c.l.b16 %v274
  %v403 = vunpack.c.l.b16 %v275
  %v404 = vunpack.c.l.b16 %v276
  %v405 = vunpack.c.l.b16 %v277
  %v406 = vunpack.c.l.b16 %v278
  %v407 = vpack.c.b16 %v392, %v391
  %v408 = vpack.c.b16 %v394, %v393
  %v409 = vpack.c.b16 %v396, %v395
  %v410 = vpack.c.b16 %v398, %v397
  %v411 = vpack.c.b16 %v400, %v399
  %v412 = vpack.c.b16 %v402, %v401
  %v413 = vpack.c.b16 %v404, %v403
  %v414 = vpack.c.b16 %v406, %v405
  %423 = vmatprep.subr.bf16.mxu0 0
  %424 = vmatpush1.bf16.msra.mxu0 %v255
  %425 = vmatprep.subr.bf16.mxu0 0
  %426 = vmatpush1.bf16.msra.mxu0 %v256
  %427 = vmatprep.subr.bf16.mxu0 0
  %428 = vmatpush1.bf16.msra.mxu0 %v257
  %429 = vmatprep.subr.bf16.mxu0 0
  %430 = vmatpush1.bf16.msra.mxu0 %v258
  %431 = vmatprep.subr.bf16.mxu0 0
  %432 = vmatpush1.bf16.msra.mxu0 %v259
  %433 = vmatprep.subr.bf16.mxu0 0
  %434 = vmatpush1.bf16.msra.mxu0 %v260
  %435 = vmatprep.subr.bf16.mxu0 0
  %436 = vmatpush1.bf16.msra.mxu0 %v261
  %437 = vmatprep.subr.bf16.mxu0 0
  %438 = vmatpush1.bf16.msra.mxu0 %v262
  %439 = vmatprep.subr.bf16.mxu0 0
  %440 = vmatpush1.bf16.msra.mxu0 0
  %441 = vmatprep.subr.bf16.mxu0 0
  %442 = vmatpush1.bf16.msra.mxu0 0
  %443 = vmatprep.subr.bf16.mxu0 0
  %444 = vmatpush1.bf16.msra.mxu0 0
  %445 = vmatprep.subr.bf16.mxu0 0
  %446 = vmatpush1.bf16.msra.mxu0 0
  %447 = vmatprep.subr.bf16.mxu0 0
  %448 = vmatpush1.bf16.msra.mxu0 0
  %449 = vmatprep.subr.bf16.mxu0 0
  %450 = vmatpush1.bf16.msra.mxu0 0
  %451 = vmatprep.subr.bf16.mxu0 0
  %452 = vmatpush1.bf16.msra.mxu0 0
  %453 = vmatprep.subr.bf16.mxu0 0
  %454 = vmatpush1.bf16.msra.mxu0 0
  %455 = vmatprep.mubr.bf16.mxu0 0
  %456 = vmatmul.mubr.bf16.gmra.mrb[0].mxu0 %v407
  %v457 = vpop.f32.mrb[0].mxu0
  %v458 = vadd.f32 %v298, %v457
  %v459 = vpop.f32.mrb[0].mxu0
  %v460 = vpop.f32.mrb[0].mxu0
  %v461 = vadd.f32 %v303, %v460
  %v462 = vpop.f32.mrb[0].mxu0
  %463 = vmatprep.mubr.bf16.mxu0 0
  %464 = vmatmul.mubr.bf16.gmra.mrb[0].mxu0 %v408
  %v465 = vpop.f32.mrb[0].mxu0
  %v466 = vadd.f32 %v308, %v465
  %v467 = vpop.f32.mrb[0].mxu0
  %v468 = vpop.f32.mrb[0].mxu0
  %v469 = vadd.f32 %v313, %v468
  %v470 = vpop.f32.mrb[0].mxu0
  %471 = vmatprep.mubr.bf16.mxu0 0
  %472 = vmatmul.mubr.bf16.gmra.mrb[0].mxu0 %v409
  %v473 = vpop.f32.mrb[0].mxu0
  %v474 = vadd.f32 %v318, %v473
  %v475 = vpop.f32.mrb[0].mxu0
  %v476 = vpop.f32.mrb[0].mxu0
  %v477 = vadd.f32 %v323, %v476
  %v478 = vpop.f32.mrb[0].mxu0
  %479 = vmatprep.mubr.bf16.mxu0 0
  %480 = vmatmul.mubr.bf16.gmra.mrb[0].mxu0 %v410
  %v481 = vpop.f32.mrb[0].mxu0
  %v482 = vadd.f32 %v328, %v481
  %v483 = vpop.f32.mrb[0].mxu0
  %v484 = vpop.f32.mrb[0].mxu0
  %v485 = vadd.f32 %v333, %v484
  %v486 = vpop.f32.mrb[0].mxu0
  %487 = vmatprep.mubr.bf16.mxu0 0
  %488 = vmatmul.mubr.bf16.gmra.mrb[0].mxu0 %v411
  %v489 = vpop.f32.mrb[0].mxu0
  %v490 = vadd.f32 %v338, %v489
  %v491 = vpop.f32.mrb[0].mxu0
  %v492 = vpop.f32.mrb[0].mxu0
  %v493 = vadd.f32 %v343, %v492
  %v494 = vpop.f32.mrb[0].mxu0
  %495 = vmatprep.mubr.bf16.mxu0 0
  %496 = vmatmul.mubr.bf16.gmra.mrb[0].mxu0 %v412
  %v497 = vpop.f32.mrb[0].mxu0
  %v498 = vadd.f32 %v348, %v497
  %v499 = vpop.f32.mrb[0].mxu0
  %v500 = vpop.f32.mrb[0].mxu0
  %v501 = vadd.f32 %v353, %v500
  %v502 = vpop.f32.mrb[0].mxu0
  %503 = vmatprep.mubr.bf16.mxu0 0
  %504 = vmatmul.mubr.bf16.gmra.mrb[0].mxu0 %v413
  %v505 = vpop.f32.mrb[0].mxu0
  %v506 = vadd.f32 %v358, %v505
  %v507 = vpop.f32.mrb[0].mxu0
  %v508 = vpop.f32.mrb[0].mxu0
  %v509 = vadd.f32 %v363, %v508
  %v510 = vpop.f32.mrb[0].mxu0
  %511 = vmatprep.mubr.bf16.mxu0 0
  %512 = vmatmul.mubr.bf16.gmra.mrb[0].mxu0 %v414
  %v513 = vpop.f32.mrb[0].mxu0
  %v514 = vadd.f32 %v368, %v513
  %v515 = vpop.f32.mrb[0].mxu0
  %v516 = vpop.f32.mrb[0].mxu0
  %v517 = vadd.f32 %v373, %v516
  %v518 = vpop.f32.mrb[0].mxu0
  %519 = vdwg.mxu0
  %vm520 = vcmp.ge.f32.partialorder %v458, 0.0
  %vm521 = vcmp.ge.f32.partialorder %v461, 0.0
  %vm522 = vcmp.ge.f32.partialorder %v466, 0.0
  %vm523 = vcmp.ge.f32.partialorder %v469, 0.0
  %vm524 = vcmp.ge.f32.partialorder %v474, 0.0
  %vm525 = vcmp.ge.f32.partialorder %v477, 0.0
  %vm526 = vcmp.ge.f32.partialorder %v482, 0.0
  %vm527 = vcmp.ge.f32.partialorder %v485, 0.0
  %vm528 = vcmp.ge.f32.partialorder %v490, 0.0
  %vm529 = vcmp.ge.f32.partialorder %v493, 0.0
  %vm530 = vcmp.ge.f32.partialorder %v498, 0.0
  %vm531 = vcmp.ge.f32.partialorder %v501, 0.0
  %vm532 = vcmp.ge.f32.partialorder %v506, 0.0
  %vm533 = vcmp.ge.f32.partialorder %v509, 0.0
  %vm534 = vcmp.ge.f32.partialorder %v514, 0.0
  %vm535 = vcmp.ge.f32.partialorder %v517, 0.0
  %v536 = vmul.f32 %v458, 0.01
  %v537 = vmul.f32 %v461, 0.01
  %v538 = vmul.f32 %v466, 0.01
  %v539 = vmul.f32 %v469, 0.01
  %v540 = vmul.f32 %v474, 0.01
  %v541 = vmul.f32 %v477, 0.01
  %v542 = vmul.f32 %v482, 0.01
  %v543 = vmul.f32 %v485, 0.01
  %v544 = vmul.f32 %v490, 0.01
  %v545 = vmul.f32 %v493, 0.01
  %v546 = vmul.f32 %v498, 0.01
  %v547 = vmul.f32 %v501, 0.01
  %v548 = vmul.f32 %v506, 0.01
  %v549 = vmul.f32 %v509, 0.01
  %v550 = vmul.f32 %v514, 0.01
  %v551 = vmul.f32 %v517, 0.01
  %v552 = vsel %vm520, %v458, %v536
  %v553 = vsel %vm521, %v461, %v537
  %v554 = vsel %vm522, %v466, %v538
  %v555 = vsel %vm523, %v469, %v539
  %v556 = vsel %vm524, %v474, %v540
  %v557 = vsel %vm525, %v477, %v541
  %v558 = vsel %vm526, %v482, %v542
  %v559 = vsel %vm527, %v485, %v543
  %v560 = vsel %vm528, %v490, %v544
  %v561 = vsel %vm529, %v493, %v545
  %v562 = vsel %vm530, %v498, %v546
  %v563 = vsel %vm531, %v501, %v547
  %v564 = vsel %vm532, %v506, %v548
  %v565 = vsel %vm533, %v509, %v549
  %v566 = vsel %vm534, %v514, %v550
  %v567 = vsel %vm535, %v517, %v551
  %v568 = vpack.c.bf16 %v553, %v552
  %v569 = vpack.c.bf16 %v555, %v554
  %v570 = vpack.c.bf16 %v557, %v556
  %v571 = vpack.c.bf16 %v559, %v558
  %v572 = vpack.c.bf16 %v561, %v560
  %v573 = vpack.c.bf16 %v563, %v562
  %v574 = vpack.c.bf16 %v565, %v564
  %v575 = vpack.c.bf16 %v567, %v566
  %v576 = vld [vmem:[%s4] sm:$0x1]
  %v577 = vld [vmem:[%s5] sm:$0x3]
  %579 = vset.pattern.permute.xlu0 0
  %580 = vperm.xlu0 %579, %v577
  %v581 = vpop.permute.xlu0 %580
  %583 = vmatprep.subr.bf16.mxu0 0
  %584 = vmatpush1.bf16.msra.mxu0 %v568
  %585 = vmatprep.subr.bf16.mxu0 0
  %586 = vmatpush1.bf16.msra.mxu0 %v569
  %587 = vmatprep.subr.bf16.mxu0 0
  %588 = vmatpush1.bf16.msra.mxu0 %v570
  %589 = vmatprep.subr.bf16.mxu0 0
  %590 = vmatpush1.bf16.msra.mxu0 %v571
  %591 = vmatprep.subr.bf16.mxu0 0
  %592 = vmatpush1.bf16.msra.mxu0 %v572
  %593 = vmatprep.subr.bf16.mxu0 0
  %594 = vmatpush1.bf16.msra.mxu0 %v573
  %595 = vmatprep.subr.bf16.mxu0 0
  %596 = vmatpush1.bf16.msra.mxu0 %v574
  %597 = vmatprep.subr.bf16.mxu0 0
  %598 = vmatpush1.bf16.msra.mxu0 %v575
  %599 = vmatprep.subr.bf16.mxu0 0
  %600 = vmatpush1.bf16.msra.mxu0 0
  %601 = vmatprep.subr.bf16.mxu0 0
  %602 = vmatpush1.bf16.msra.mxu0 0
  %603 = vmatprep.subr.bf16.mxu0 0
  %604 = vmatpush1.bf16.msra.mxu0 0
  %605 = vmatprep.subr.bf16.mxu0 0
  %606 = vmatpush1.bf16.msra.mxu0 0
  %607 = vmatprep.subr.bf16.mxu0 0
  %608 = vmatpush1.bf16.msra.mxu0 0
  %609 = vmatprep.subr.bf16.mxu0 0
  %610 = vmatpush1.bf16.msra.mxu0 0
  %611 = vmatprep.subr.bf16.mxu0 0
  %612 = vmatpush1.bf16.msra.mxu0 0
  %613 = vmatprep.subr.bf16.mxu0 0
  %614 = vmatpush1.bf16.msra.mxu0 0
  %615 = vmatprep.mubr.bf16.mxu0 0
  %616 = vmatmul.mubr.bf16.gmra.mrb[0].mxu0 %v576
  %v617 = vpop.f32.mrb[0].mxu0
  %v618 = vadd.f32 %v581, %v617
  %v619 = vpop.f32.mrb[0].mxu0
  %v620 = vpop.f32.mrb[0].mxu0
  %v621 = vpop.f32.mrb[0].mxu0
  %622 = vdwg.mxu0
  %vm623 = vcmp.ge.f32.partialorder %v618, 0.0
  %v624 = vmul.f32 %v618, 0.01
  %v625 = vsel %vm623, %v618, %v624
  %626 = vst [vmem:[%s6] sm:$0x3] %v625
  // Predicated region
  $region26: #{denoiser_forward.1} parent=0 // pred_check
    _
  $region27: #{denoiser_forward.1} parent=0 // pred_check_branch
    %628 = sbr.rel (0) target = $region29
  $region28: #{denoiser_forward.1} parent=0 // pred_region
    _
  $region29: #{denoiser_forward.1} parent=0 // pred_fallthru
    _
  // Predicated region
  $region30: #{denoiser_forward.1} parent=0 // pred_check
    _
  $region31: #{denoiser_forward.1} parent=0 // pred_check_branch
    %630 = sbr.rel (0) target = $region33
  $region32: #{denoiser_forward.1} parent=0 // pred_region
    _
  $region33: #{denoiser_forward.1} parent=0 // pred_fallthru
    _

</llo_original>
